<compile_context>
chip_gen: v7x
topology: tpu7x:2x2x1
jax: 0.10.0
libtpu: 0.0.40
codegen_flags: <defaults>
</compile_context>

<pallas_src>
import math

import jax
import jax.numpy as jnp
from jax.experimental import pallas as pl
from jax.experimental.pallas import tpu as pltpu

LAYER_NORM_EPS = 1e-12
_INV_SQRT_2 = 1.0 / math.sqrt(2.0)


def _entity_head_kernel(x_ref, w_ref, params_ref, o_ref):
    # x_ref:      (tm, H)   input row tile (native dtype: bf16 or f32)
    # w_ref:      (H, E)    dense weight, resident across the whole grid
    # params_ref: (3, E)    rows = [dense_bias, ln_gamma, ln_beta], f32
    # o_ref:      (tm, E)
    # MXU matmul: native-dtype operands, f32 accumulation.
    h = jnp.dot(x_ref[...], w_ref[...], preferred_element_type=jnp.float32)

    params = params_ref[...]            # (3, E) f32
    bias = params[0:1, :]
    gamma = params[1:2, :]
    beta = params[2:3, :]

    h = h + bias

    # Exact (erf-based) GELU, matches HF's ACT2FN["gelu"].
    # TODO(synk): on v5e, if profiling shows the VALU slot binding, switch to
    # the tanh approximation so the transcendental moves to the EUP slot
    # (slight numerics change vs exact erf).
    h = 0.5 * h * (1.0 + jax.lax.erf(h * _INV_SQRT_2))

    # LayerNorm over the last dim, in f32.
    mean = jnp.mean(h, axis=-1, keepdims=True)
    centered = h - mean
    var = jnp.mean(centered * centered, axis=-1, keepdims=True)
    normed = centered * jax.lax.rsqrt(var + LAYER_NORM_EPS)

    o_ref[...] = (normed * gamma + beta).astype(o_ref.dtype)


def _round_up(x, m):
    return ((x + m - 1) // m) * m


def entity_prediction_head_transform(hidden_states, dense_w, dense_b,
                                     ln_gamma, ln_beta, *,
                                     tile_m=1024,
                                     vmem_cap_bytes=64 * 1024 * 1024):
    """hidden_states: [B, S, H] -> [B, S, E]."""
    B, S, H = hidden_states.shape
    E = dense_w.shape[1]
    M = B * S

    x_it = jnp.dtype(hidden_states.dtype).itemsize
    w_it = jnp.dtype(dense_w.dtype).itemsize
    o_it = x_it  # output keeps the input dtype (bf16 stays bf16 end-to-end)

    # Dtype-matched sublane multiple: f32 -> 8, bf16 -> 16, int8/fp8 -> 32.
    sub = {4: 8, 2: 16, 1: 32}.get(x_it, 8)

    # Row tile: as large as possible (DMA efficiency), clamped to the problem.
    tm = _round_up(min(tile_m, _round_up(M, sub)), sub)

    # v7x megacore: when there is enough work for it, keep grid_m >= 2 so the
    # "parallel" grid axis can be sharded across both TensorCores.
    if pl.cdiv(M, tm) == 1 and M >= 512:
        tm = _round_up(pl.cdiv(M, 2), sub)

    # Stay inside per-generation VMEM budgets (v5e scoped default 16 MiB,
    # v7x 64 MiB physical per TC): double-buffered x/out tiles + resident
    # W + params slab.
    # TODO(synk): single-buffer the constant W/params blocks via
    # pipeline_mode=pl.Buffered(1) once supported in the grid-based
    # pallas_call path; default double-buffering wastes ~H*E*itemsize VMEM.
    def _vmem_bytes(t):
        return 2 * (t * H * x_it + t * E * o_it + H * E * w_it + 3 * E * 4)

    while tm > sub and _vmem_bytes(tm) > vmem_cap_bytes - (4 << 20):
        tm = _round_up(tm // 2, sub)

    grid_m = pl.cdiv(M, tm)
    vmem_limit = int(min(max(_vmem_bytes(tm) + (4 << 20), 16 << 20),
                         vmem_cap_bytes))

    # No wrapper-side padding / slicing: ragged last block handled by Pallas.
    x2d = hidden_states.reshape(M, H)

    # Single (3, E) f32 parameter slab: [dense_bias, ln_gamma, ln_beta].
    params = jnp.stack(
        [dense_b.astype(jnp.float32),
         ln_gamma.astype(jnp.float32),
         ln_beta.astype(jnp.float32)], axis=0)

    cost = pl.CostEstimate(
        flops=2 * M * H * E,
        transcendentals=M * E,
        bytes_accessed=M * H * x_it + H * E * w_it + 3 * E * 4 + M * E * o_it,
    )

    # TODO(synk): if a real config uses entity_emb_size E < 128, the output
    # tile is lane-sparse (masked stores); pack the output into a lane-dense
    # slab in the wrapper in that case.
    out = pl.pallas_call(
        _entity_head_kernel,
        out_shape=jax.ShapeDtypeStruct((M, E), hidden_states.dtype),
        grid_spec=pltpu.PrefetchScalarGridSpec(
            num_scalar_prefetch=0,
            grid=(grid_m,),
            in_specs=[
                pl.BlockSpec((tm, H), lambda i: (i, 0)),
                pl.BlockSpec((H, E), lambda i: (0, 0)),
                pl.BlockSpec((3, E), lambda i: (0, 0)),
            ],
            out_specs=pl.BlockSpec((tm, E), lambda i: (i, 0)),
        ),
        compiler_params=pltpu.CompilerParams(
            dimension_semantics=("parallel",),
            vmem_limit_bytes=vmem_limit),
        cost_estimate=cost,
    )(x2d, dense_w, params)

    return out.reshape(B, S, E)


def _reference(hidden_states, dense_w, dense_b, ln_gamma, ln_beta):
    h = jnp.einsum("bsh,he->bse", hidden_states.astype(jnp.float32),
                   dense_w.astype(jnp.float32)) + dense_b.astype(jnp.float32)
    h = 0.5 * h * (1.0 + jax.lax.erf(h * _INV_SQRT_2))
    mean = jnp.mean(h, axis=-1, keepdims=True)
    var = jnp.mean((h - mean) ** 2, axis=-1, keepdims=True)
    h = (h - mean) * jax.lax.rsqrt(var + LAYER_NORM_EPS)
    return h * ln_gamma.astype(jnp.float32) + ln_beta.astype(jnp.float32)


if __name__ == "__main__":
    # Small config: hidden_size=32, entity_emb_size=32, batch=2, seq=8
    B, S, H, E = 2, 8, 32, 32

    key = jax.random.PRNGKey(0)
    k_x, k_w, k_b, k_g, k_be = jax.random.split(key, 5)

    hidden_states = jax.random.normal(k_x, (B, S, H), dtype=jnp.float32)
    # Deterministic parameter init (synthetic; not a checkpoint load)
    dense_w = jax.random.normal(k_w, (H, E), dtype=jnp.float32) * 0.02
    dense_b = jax.random.normal(k_b, (E,), dtype=jnp.float32) * 0.02
    ln_gamma = jnp.ones((E,), dtype=jnp.float32) + \
        jax.random.normal(k_g, (E,), dtype=jnp.float32) * 0.01
    ln_beta = jax.random.normal(k_be, (E,), dtype=jnp.float32) * 0.01

    out = entity_prediction_head_transform(
        hidden_states, dense_w, dense_b, ln_gamma, ln_beta)
    out = jax.block_until_ready(out)
    ref = _reference(hidden_states, dense_w, dense_b, ln_gamma, ln_beta)
    assert out.shape == (B, S, E)
    assert jnp.allclose(out, ref, atol=1e-5, rtol=1e-5), "mismatch vs reference"

    # Ragged-M path (no wrapper padding): M = 10 rows, tm = 8 -> grid of 2
    # with a partial last block.
    B2, S2 = 2, 5
    hs2 = jax.random.normal(k_x, (B2, S2, H), dtype=jnp.float32)
    out2 = entity_prediction_head_transform(
        hs2, dense_w, dense_b, ln_gamma, ln_beta, tile_m=8)
    out2 = jax.block_until_ready(out2)
    ref2 = _reference(hs2, dense_w, dense_b, ln_gamma, ln_beta)
    assert out2.shape == (B2, S2, E)
    assert jnp.allclose(out2, ref2, atol=1e-5, rtol=1e-5), \
        "mismatch vs reference (ragged M)"

    print("KERNEL_OK")
</pallas_src>

<mosaic_0001>
module attributes {stable_mosaic.version = 11 : i64} {
  func.func @_entity_head_kernel(%arg0: i32, %arg1: memref<16x32xf32, #tpu.memory_space<vmem>>, %arg2: memref<32x32xf32, #tpu.memory_space<vmem>>, %arg3: memref<3x32xf32, #tpu.memory_space<vmem>>, %arg4: memref<16x32xf32, #tpu.memory_space<vmem>>) attributes {dimension_semantics = [#tpu.dimension_semantics<parallel>], iteration_bounds = array<i64: 1>, scalar_prefetch = 0 : i64, scratch_operands = 0 : i64, tpu.core_type = #tpu.core_type<tc>, window_params = [{transform_indices = @transform_0, window_bounds = array<i64: 16, 32>}, {pipeline_mode = #tpu.pipeline_mode<synchronous>, transform_indices = @transform_1, window_bounds = array<i64: 32, 32>}, {pipeline_mode = #tpu.pipeline_mode<synchronous>, transform_indices = @transform_2, window_bounds = array<i64: 3, 32>}, {transform_indices = @transform_3, window_bounds = array<i64: 16, 32>}]} {
    %c0 = arith.constant 0 : index
    %c0_0 = arith.constant 0 : index
    %0 = vector.load %arg1[%c0, %c0_0] : memref<16x32xf32, #tpu.memory_space<vmem>>, vector<16x32xf32>
    %c0_1 = arith.constant 0 : index
    %c0_2 = arith.constant 0 : index
    %1 = vector.load %arg2[%c0_1, %c0_2] : memref<32x32xf32, #tpu.memory_space<vmem>>, vector<32x32xf32>
    %cst = arith.constant dense<0.000000e+00> : vector<16x32xf32>
    %2 = tpu.matmul %0, %1, %cst {dimension_numbers = #tpu.dot_dimension_numbers<[1], [0], [0], [1], [0, 0, 1, 1], [], []>} : vector<16x32xf32>, vector<32x32xf32>, vector<16x32xf32> -> vector<16x32xf32>
    %c0_3 = arith.constant 0 : index
    %c0_4 = arith.constant 0 : index
    %3 = vector.load %arg3[%c0_3, %c0_4] : memref<3x32xf32, #tpu.memory_space<vmem>>, vector<3x32xf32>
    %4 = vector.extract_strided_slice %3 {offsets = [0, 0], sizes = [1, 32], strides = [1, 1]} : vector<3x32xf32> to vector<1x32xf32>
    %5 = vector.extract_strided_slice %3 {offsets = [1, 0], sizes = [1, 32], strides = [1, 1]} : vector<3x32xf32> to vector<1x32xf32>
    %6 = vector.extract_strided_slice %3 {offsets = [2, 0], sizes = [1, 32], strides = [1, 1]} : vector<3x32xf32> to vector<1x32xf32>
    %7 = vector.broadcast %4 : vector<1x32xf32> to vector<16x32xf32>
    %8 = arith.addf %2, %7 : vector<16x32xf32>
    %cst_5 = arith.constant 5.000000e-01 : f32
    %9 = vector.broadcast %cst_5 : f32 to vector<16x32xf32>
    %10 = arith.mulf %9, %8 : vector<16x32xf32>
    %cst_6 = arith.constant 0.707106769 : f32
    %11 = vector.broadcast %cst_6 : f32 to vector<16x32xf32>
    %12 = arith.mulf %8, %11 : vector<16x32xf32>
    %13 = math.erf %12 : vector<16x32xf32>
    %cst_7 = arith.constant 1.000000e+00 : f32
    %14 = vector.broadcast %cst_7 : f32 to vector<16x32xf32>
    %15 = arith.addf %14, %13 : vector<16x32xf32>
    %16 = arith.mulf %10, %15 : vector<16x32xf32>
    %cst_8 = arith.constant dense<0.000000e+00> : vector<16xf32>
    %17 = vector.multi_reduction <add>, %16, %cst_8 [1] : vector<16x32xf32> to vector<16xf32>
    %18 = vector.shape_cast %17 : vector<16xf32> to vector<16x1xf32>
    %cst_9 = arith.constant 3.200000e+01 : f32
    %19 = vector.broadcast %cst_9 : f32 to vector<16x1xf32>
    %20 = arith.divf %18, %19 : vector<16x1xf32>
    %21 = vector.broadcast %20 : vector<16x1xf32> to vector<16x32xf32>
    %22 = arith.subf %16, %21 : vector<16x32xf32>
    %23 = arith.mulf %22, %22 : vector<16x32xf32>
    %cst_10 = arith.constant dense<0.000000e+00> : vector<16xf32>
    %24 = vector.multi_reduction <add>, %23, %cst_10 [1] : vector<16x32xf32> to vector<16xf32>
    %25 = vector.shape_cast %24 : vector<16xf32> to vector<16x1xf32>
    %cst_11 = arith.constant 3.200000e+01 : f32
    %26 = vector.broadcast %cst_11 : f32 to vector<16x1xf32>
    %27 = arith.divf %25, %26 : vector<16x1xf32>
    %cst_12 = arith.constant 9.99999996E-13 : f32
    %28 = vector.broadcast %cst_12 : f32 to vector<16x1xf32>
    %29 = arith.addf %27, %28 : vector<16x1xf32>
    %30 = math.rsqrt %29 : vector<16x1xf32>
    %31 = vector.broadcast %30 : vector<16x1xf32> to vector<16x32xf32>
    %32 = arith.mulf %22, %31 : vector<16x32xf32>
    %33 = vector.broadcast %5 : vector<1x32xf32> to vector<16x32xf32>
    %34 = arith.mulf %32, %33 : vector<16x32xf32>
    %35 = vector.broadcast %6 : vector<1x32xf32> to vector<16x32xf32>
    %36 = arith.addf %34, %35 : vector<16x32xf32>
    %c0_13 = arith.constant 0 : index
    %c0_14 = arith.constant 0 : index
    %37 = vector.load %arg4[%c0_13, %c0_14] : memref<16x32xf32, #tpu.memory_space<vmem>>, vector<16x32xf32>
    tpu.vector_store %arg4[%c0_13, %c0_14], %36 {strides = array<i32>} : memref<16x32xf32, #tpu.memory_space<vmem>>, vector<16x32xf32>,
    return
  }
  func.func @transform_0(%arg0: i32) -> (i32, i32) {
    %c0_i32 = arith.constant 0 : i32
    %c0_i32_0 = arith.constant 0 : i32
    return %arg0, %c0_i32 : i32, i32
  }
  func.func @transform_1(%arg0: i32) -> (i32, i32) {
    %c0_i32 = arith.constant 0 : i32
    %c0_i32_0 = arith.constant 0 : i32
    %c0_i32_1 = arith.constant 0 : i32
    return %c0_i32, %c0_i32_0 : i32, i32
  }
  func.func @transform_2(%arg0: i32) -> (i32, i32) {
    %c0_i32 = arith.constant 0 : i32
    %c0_i32_0 = arith.constant 0 : i32
    %c0_i32_1 = arith.constant 0 : i32
    return %c0_i32, %c0_i32_0 : i32, i32
  }
  func.func @transform_3(%arg0: i32) -> (i32, i32) {
    %c0_i32 = arith.constant 0 : i32
    %c0_i32_0 = arith.constant 0 : i32
    return %arg0, %c0_i32 : i32, i32
  }
}

</mosaic_0001>

<llo_original>
// kernel: tpu_custom_call.1
$region0: #{tpu_custom_call.1}
  #allocation0 [shape = 'u32[]', space=smem, size = 0x4, offset = 0x4, fixed_abs, tag = 'smem constant byte address 0x4 - core index']
  #allocation1 [shape = 'u32[144,128]{1,0:T(1,128)}', space=vmem, size = 0x12000, scoped, tag = 'internal scratch']
  %s0 = inlined_call_operand.hbm [shape: f32[16,32], index: 0, kind: input, shape index: {}]
  %s1 = inlined_call_operand.hbm [shape: f32[32,32], index: 1, kind: input, shape index: {}]
  %s2 = inlined_call_operand.vmem [shape: f32[3,32], index: 2, kind: input, shape index: {}]
  %s3 = inlined_call_operand.hbm [shape: f32[16,32], index: 3, kind: output, shape index: {}]
  %s4 = sld [smem:[#allocation0]]
  $region30: #{tpu_custom_call.1} parent=0
    _
  %s6 = ssub.s32 1, %s4
  %s7 = scalar_select 0, %s6, %s4
  $region1: #{tpu_custom_call.1} parent=0
    #allocation2 [shape = 'u8[8192]{0}', space=vmem, size = 0x2000, scoped, tag = 'input window, operand 0, single buffered']
    #allocation3 [shape = 's32[1]{0}', space=sflag, size = 0x4, scoped, tag = 'scoped memory for tpu_custom_call.1']
    #allocation4 [shape = 's32[1]{0}', space=sflag, size = 0x4, scoped, tag = 'scoped memory for tpu_custom_call.1']
    #allocation5 [shape = 'u8[16384]{0}', space=vmem, size = 0x4000, scoped, tag = 'input window, operand 1, single buffered']
    #allocation6 [shape = 's32[1]{0}', space=sflag, size = 0x4, scoped, tag = 'scoped memory for tpu_custom_call.1']
    #allocation7 [shape = 'u8[8192]{0}', space=vmem, size = 0x2000, scoped, tag = 'output window, operand 0, single buffered']
    %8 = vsyncpa [#allocation3], 0
    %9 = vsyncpa [#allocation6], 0
    %10 = vsyncpa [#allocation4], 0
    // Predicated region
    $region2: #{tpu_custom_call.1} parent=1 // pred_check
      _
    $region3: #{tpu_custom_call.1} parent=1 // pred_check_branch
      %12 = sbr.rel (0) target = $region5
    $region4: #{tpu_custom_call.1} parent=1 // pred_region
      %s14 = ssub.s32 256, 256
      %15 = vsyncadd [#allocation3], %s14
      %s16 = sshll.u32 [#allocation2], 4
      %s17 = int_to_ptr.vmem [resolvable:$true] %s16
      %22 = dma.hbm_to_vmem [thread:$0]  %s0, 256, %s17, [#allocation3], 128, 128, 8
    $region5: #{tpu_custom_call.1} parent=1 // pred_fallthru
      _
    // Predicated region
    $region6: #{tpu_custom_call.1} parent=1 // pred_check
      _
    $region7: #{tpu_custom_call.1} parent=1 // pred_check_branch
      %24 = sbr.rel (0) target = $region9
    $region8: #{tpu_custom_call.1} parent=1 // pred_region
      %s26 = ssub.s32 512, 512
      %27 = vsyncadd [#allocation6], %s26
      %s28 = sshll.u32 [#allocation5], 4
      %s29 = int_to_ptr.vmem [resolvable:$true] %s28
      %34 = dma.hbm_to_vmem [thread:$0]  %s1, 512, %s29, [#allocation6], 128, 128, 8
    $region9: #{tpu_custom_call.1} parent=1 // pred_fallthru
      _
    // Predicated region
    $region10: #{tpu_custom_call.1} parent=1 // pred_check
      _
    $region11: #{tpu_custom_call.1} parent=1 // pred_check_branch
      %36 = sbr.rel (0) target = $region13
    $region12: #{tpu_custom_call.1} parent=1 // pred_region
      _
    $region13: #{tpu_custom_call.1} parent=1 // pred_fallthru
      _
    // Predicated region
    $region14: #{tpu_custom_call.1} parent=1 // pred_check
      _
    $region15: #{tpu_custom_call.1} parent=1 // pred_check_branch
      %38 = sbr.rel (0) target = $region17
    $region16: #{tpu_custom_call.1} parent=1 // pred_region
      %39 = dma.done [#allocation3], 256
    $region17: #{tpu_custom_call.1} parent=1 // pred_fallthru
      _
    // Predicated region
    $region18: #{tpu_custom_call.1} parent=1 // pred_check
      _
    $region19: #{tpu_custom_call.1} parent=1 // pred_check_branch
      %41 = sbr.rel (0) target = $region21
    $region20: #{tpu_custom_call.1} parent=1 // pred_region
      %42 = dma.done [#allocation6], 512
    $region21: #{tpu_custom_call.1} parent=1 // pred_fallthru
      _
    %v43 = vld [vmem:[#allocation2] sm:$0xff]
    %v44 = vld [vmem:[#allocation2 + $0x8] sm:$0xff]
    %v45 = vld [vmem:[#allocation5] sm:$0xff]
    %v46 = vld [vmem:[#allocation5 + $0x8] sm:$0xff]
    %v47 = vld [vmem:[#allocation5 + $0x10] sm:$0xff]
    %v48 = vld [vmem:[#allocation5 + $0x18] sm:$0xff]
    %v49 = vld [vmem:[%s2] sm:$0x7]
    %v50 = vlaneseq
    %v51 = vshrl.u32 %v50, 7
    %v52 = vsub.s32 0, %v51
    %v53 = vrot.slane %v49, %v52
    %vm54 = vcmask 261120
    %v56 = vsel %vm54, %v43, 0
    %v59 = vsel %vm54, %v44, 0
    %61 = vmatprep.subr.mxu0 0.0
    %62 = vmatpush1.msra.mxu0 %v45
    %63 = vmatprep.subr.mxu0 0.0
    %64 = vmatpush1.msra.mxu0 %v46
    %65 = vmatprep.subr.mxu0 0.0
    %66 = vmatpush1.msra.mxu0 %v47
    %67 = vmatprep.subr.mxu0 0.0
    %68 = vmatpush1.msra.mxu0 %v48
    %69 = vmatprep.subr.mxu0 0.0
    %70 = vmatpush1.msra.mxu0 0.0
    %71 = vmatprep.subr.mxu0 0.0
    %72 = vmatpush1.msra.mxu0 0.0
    %73 = vmatprep.subr.mxu0 0.0
    %74 = vmatpush1.msra.mxu0 0.0
    %75 = vmatprep.subr.mxu0 0.0
    %76 = vmatpush1.msra.mxu0 0.0
    %77 = vmatprep.subr.mxu0 0.0
    %78 = vmatpush1.msra.mxu0 0.0
    %79 = vmatprep.subr.mxu0 0.0
    %80 = vmatpush1.msra.mxu0 0.0
    %81 = vmatprep.subr.mxu0 0.0
    %82 = vmatpush1.msra.mxu0 0.0
    %83 = vmatprep.subr.mxu0 0.0
    %84 = vmatpush1.msra.mxu0 0.0
    %85 = vmatprep.subr.mxu0 0.0
    %86 = vmatpush1.msra.mxu0 0.0
    %87 = vmatprep.subr.mxu0 0.0
    %88 = vmatpush1.msra.mxu0 0.0
    %89 = vmatprep.subr.mxu0 0.0
    %90 = vmatpush1.msra.mxu0 0.0
    %91 = vmatprep.subr.mxu0 0.0
    %92 = vmatpush1.msra.mxu0 0.0
    %93 = vmatprep.subr.mxu0 0.0
    %94 = vmatpush1.msra.mxu0 0.0
    %95 = vmatprep.subr.mxu0 0.0
    %96 = vmatpush1.msra.mxu0 0.0
    %97 = vmatprep.subr.mxu0 0.0
    %98 = vmatpush1.msra.mxu0 0.0
    %99 = vmatprep.subr.mxu0 0.0
    %100 = vmatpush1.msra.mxu0 0.0
    %101 = vmatprep.subr.mxu0 0.0
    %102 = vmatpush1.msra.mxu0 0.0
    %103 = vmatprep.subr.mxu0 0.0
    %104 = vmatpush1.msra.mxu0 0.0
    %105 = vmatprep.subr.mxu0 0.0
    %106 = vmatpush1.msra.mxu0 0.0
    %107 = vmatprep.subr.mxu0 0.0
    %108 = vmatpush1.msra.mxu0 0.0
    %109 = vmatprep.subr.mxu0 0.0
    %110 = vmatpush1.msra.mxu0 0.0
    %111 = vmatprep.subr.mxu0 0.0
    %112 = vmatpush1.msra.mxu0 0.0
    %113 = vmatprep.subr.mxu0 0.0
    %114 = vmatpush1.msra.mxu0 0.0
    %115 = vmatprep.subr.mxu0 0.0
    %116 = vmatpush1.msra.mxu0 0.0
    %117 = vmatprep.subr.mxu0 0.0
    %118 = vmatpush1.msra.mxu0 0.0
    %119 = vmatprep.subr.mxu0 0.0
    %120 = vmatpush1.msra.mxu0 0.0
    %121 = vmatprep.subr.mxu0 0.0
    %122 = vmatpush1.msra.mxu0 0.0
    %123 = vmatprep.subr.mxu0 0.0
    %124 = vmatpush1.msra.mxu0 0.0
    %125 = vmatprep.mubr.f32.mxu0 0.0
    %126 = vmatmul.mubr.f32.gmra.mrb[0].mxu0 %v56
    %v127 = vpop.f32.mrb[0].mxu0
    %v128 = vadd.f32 %v53, %v127
    %v129 = vpop.f32.mrb[0].mxu0
    %130 = vmatprep.mubr.f32.mxu0 0.0
    %131 = vmatmul.mubr.f32.gmra.mrb[0].mxu0 %v59
    %v132 = vpop.f32.mrb[0].mxu0
    %v133 = vadd.f32 %v53, %v132
    %v134 = vpop.f32.mrb[0].mxu0
    %135 = vdwg.mxu0
    %v136 = vmul.f32 %v128, 0.5
    %v137 = vmul.f32 %v133, 0.5
    %v138 = vmul.f32 %v128, 0.70710677
    %v139 = vmul.f32 %v133, 0.70710677
    %v140 = verf.f32.pop %v138
    %v141 = verf.f32.pop %v139
    %v142 = vadd.f32 %v140, 1.0
    %v143 = vadd.f32 %v141, 1.0
    %v144 = vmul.f32 %v136, %v142
    %v145 = vmul.f32 %v137, %v143
    %v146 = vsel %vm54, %v144, 0.0
    %147 = vadd.xlane.f32.xlu0 %v146
    %v148 = vpop.xlane.xlu0 %147
    %v149 = vsel %vm54, %v145, 0.0
    %150 = vadd.xlane.f32.xlu0 %v149
    %v151 = vpop.xlane.xlu0 %150
    %v152 = vrcp.pop 32.0
    %v153 = vmul.f32 %v148, %v152
    %v154 = vmul.f32 %v151, %v152
    %v155 = vsub.f32 %v144, %v153
    %v156 = vsub.f32 %v145, %v154
    %v157 = vmul.f32 %v155, %v155
    %v158 = vmul.f32 %v156, %v156
    %v159 = vsel %vm54, %v157, 0.0
    %160 = vadd.xlane.f32.xlu0 %v159
    %v161 = vpop.xlane.xlu0 %160
    %v162 = vsel %vm54, %v158, 0.0
    %163 = vadd.xlane.f32.xlu0 %v162
    %v164 = vpop.xlane.xlu0 %163
    %v165 = vmul.f32 %v161, %v152
    %v166 = vmul.f32 %v164, %v152
    %v167 = vadd.f32 %v165, 1e-12
    %v168 = vadd.f32 %v166, 1e-12
    %v169 = vrsqrt.pop %v167
    %v170 = vrsqrt.pop %v168
    %v171 = vmul.f32 %v155, %v169
    %v172 = vmul.f32 %v156, %v170
    %v173 = vlaneseq
    %v174 = vshrl.u32 %v173, 7
    %v175 = vsub.s32 1, %v174
    %v176 = vrot.slane %v49, %v175
    %v177 = vmul.f32 %v171, %v176
    %v178 = vmul.f32 %v172, %v176
    %v179 = vlaneseq
    %v180 = vshrl.u32 %v179, 7
    %v181 = vsub.s32 2, %v180
    %v182 = vrot.slane %v49, %v181
    %v183 = vadd.f32 %v177, %v182
    %v184 = vadd.f32 %v178, %v182
    %185 = vst.msk [vmem:[#allocation7] sm:$0xff] %vm54, %v183
    %186 = vst.msk [vmem:[#allocation7 + $0x8] sm:$0xff] %vm54, %v184
    // Predicated region
    $region22: #{tpu_custom_call.1} parent=1 // pred_check
      _
    $region23: #{tpu_custom_call.1} parent=1 // pred_check_branch
      %188 = sbr.rel (0) target = $region25
    $region24: #{tpu_custom_call.1} parent=1 // pred_region
      %s190 = ssub.s32 256, 256
      %191 = vsyncadd [#allocation4], %s190
      %s192 = sshll.u32 [#allocation7], 4
      %s193 = int_to_ptr.vmem [resolvable:$true] %s192
      %198 = dma.vmem_to_hbm [thread:$0]  %s193, 256, %s3, [#allocation4], 128, 128, 8
    $region25: #{tpu_custom_call.1} parent=1 // pred_fallthru
      _
    // Predicated region
    $region26: #{tpu_custom_call.1} parent=1 // pred_check
      _
    $region27: #{tpu_custom_call.1} parent=1 // pred_check_branch
      %200 = sbr.rel (0) target = $region29
    $region28: #{tpu_custom_call.1} parent=1 // pred_region
      %201 = dma.done [#allocation4], 256
    $region29: #{tpu_custom_call.1} parent=1 // pred_fallthru
      _
    %202 = vsyncpa [#allocation3], 1
    %203 = vsyncpa [#allocation6], 1
    %204 = vsyncpa [#allocation4], 1

</llo_original>
